<compile_context>
chip_gen: v7x
topology: tpu7x:2x2x1
jax: 0.10.0
libtpu: 0.0.40
codegen_flags: <defaults>
</compile_context>

<pallas_src>
import functools
import math

import jax
import jax.numpy as jnp
from jax import lax
from jax.experimental import pallas as pl
from jax.experimental.pallas import tpu as pltpu


# ----------------------------- config ---------------------------------------
B = 2            # batch
S = 8            # sequence length
H = 32           # backbone hidden size (embedding_dim)
HIDDEN_DIMS = [64, 32]
N_CLASSES = 5
VOCAB = 17
LANE = 128       # TPU lane width


def _round_up(x, m):
    return (x + m - 1) // m * m


def _pick_tm():
    """M-tile for the batched head: 128 on v5e and older (128-wide MXU),
    256 on v6e / v7x (256-wide MXU)."""
    try:
        kind = jax.devices()[0].device_kind.lower()
    except Exception:
        return 128
    if any(v in kind for v in ("v2", "v3", "v4", "v5")):
        return 128
    return 256


def _exact_gelu(x):
    # PyTorch nn.GELU() default: exact (erf-based) GELU, computed in f32.
    return 0.5 * x * (1.0 + lax.erf(x * (1.0 / math.sqrt(2.0))))


# ----------------------------- kernel ---------------------------------------
def bprm_head_kernel(k_offsets, x_ref, w_ref, b_ref, out_ref):
    """One M-tile of pooled rows through the MLP head.

    x_ref:   [TM, H]        bf16  pooled last-token activations
    w_ref:   [K_total, Np]  bf16  all layers' (zero-padded) weights stacked on K
    b_ref:   [L, Np]        f32   one zero-padded bias row per layer
    out_ref: [TM, Np]       f32   padded logits
    k_offsets: static per-layer row offsets into w_ref (len = L + 1).
    """
    n_layers = len(k_offsets) - 1
    x = x_ref[...]                                           # [TM, H] bf16
    for li in range(n_layers):
        k0, k1 = k_offsets[li], k_offsets[li + 1]            # static slice
        y = jnp.dot(x, w_ref[k0:k1, :],
                    preferred_element_type=jnp.float32) + b_ref[li:li + 1, :]
        if li < n_layers - 1:
            # f32 GELU on VPU/EUP, bf16 back to the MXU for the next layer.
            x = _exact_gelu(y).astype(jnp.bfloat16)
        else:
            out_ref[...] = y.astype(out_ref.dtype)           # lane-dense store


# ----------------------------- wrapper ---------------------------------------
def bprm_forward(last_hidden_state, attention_mask, weights, biases, *, tm=None):
    """last_hidden_state: [B, S, H] f32, attention_mask: [B, S] int.

    weights[i]: [in, out] (x @ W + b convention), biases[i]: [out].
    Returns logits [B, n_classes] f32.
    """
    b_sz, s_len, h_dim = last_hidden_state.shape
    n_layers = len(weights)
    n_classes = weights[-1].shape[-1]
    tm = tm or _pick_tm()

    # --- last-token pooling in the wrapper: [B, H] instead of [B, S, H] ------
    # `% s_len` makes an all-zero mask row behave like PyTorch's index -1.
    last_idx = ((jnp.sum(attention_mask.astype(jnp.int32), axis=-1) - 1)
                % s_len).astype(jnp.int32)                           # [B]
    pooled = last_hidden_state[jnp.arange(b_sz), last_idx]           # [B, H]
    pooled = pooled.astype(jnp.bfloat16)                             # halve DMA bytes

    # pad batch to a multiple of the M-tile (padded rows are zero, sliced off)
    b_pad = _round_up(max(b_sz, tm), tm)
    pooled = jnp.pad(pooled, ((0, b_pad - b_sz), (0, 0)))            # [B_pad, H]

    # --- pack the head: one [K_total, Np] bf16 weight slab, one [L, Np] bias --
    n_pad = max(_round_up(w.shape[1], LANE) for w in weights)        # 128 here
    w_rows, b_rows, k_offsets = [], [], [0]
    prev_in = h_dim
    for w, bias in zip(weights, biases):
        din, dout = w.shape
        w_p = jnp.zeros((prev_in, n_pad), jnp.bfloat16)
        w_p = w_p.at[:din, :dout].set(w.astype(jnp.bfloat16))
        b_p = jnp.zeros((n_pad,), jnp.float32).at[:dout].set(bias)
        w_rows.append(w_p)
        b_rows.append(b_p)
        k_offsets.append(k_offsets[-1] + prev_in)
        prev_in = n_pad
    w_slab = jnp.concatenate(w_rows, axis=0)                         # [K_total, Np]
    b_slab = jnp.stack(b_rows, axis=0)                               # [L, Np]
    k_total = w_slab.shape[0]

    grid_spec = pltpu.PrefetchScalarGridSpec(
        num_scalar_prefetch=0,
        grid=(b_pad // tm,),
        in_specs=[
            pl.BlockSpec((tm, h_dim), lambda m: (m, 0)),             # row tile
            pl.BlockSpec((k_total, n_pad), lambda m: (0, 0)),        # fetched once
            pl.BlockSpec((n_layers, n_pad), lambda m: (0, 0)),       # fetched once
        ],
        out_specs=pl.BlockSpec((tm, n_pad), lambda m: (m, 0)),
    )

    out = pl.pallas_call(
        functools.partial(bprm_head_kernel, tuple(int(k) for k in k_offsets)),
        out_shape=jax.ShapeDtypeStruct((b_pad, n_pad), jnp.float32),
        grid_spec=grid_spec,
        compiler_params=pltpu.CompilerParams(
            dimension_semantics=("parallel",)),   # 2 TCs split the row tiles
    )(pooled, w_slab, b_slab)

    return out[:b_sz, :n_classes]


# ----------------------------- param init ------------------------------------
def init_head_params(key, in_dim, hidden_dims, n_classes):
    dims = [in_dim] + list(hidden_dims) + [n_classes]
    weights, biases = [], []
    for i in range(len(dims) - 1):
        key, kw, kb = jax.random.split(key, 3)
        bound = 1.0 / math.sqrt(dims[i])
        # stored as [in, out] so the kernel computes x @ W + b
        weights.append(jax.random.uniform(
            kw, (dims[i], dims[i + 1]), jnp.float32, -bound, bound))
        biases.append(jax.random.uniform(
            kb, (dims[i + 1],), jnp.float32, -bound, bound))
    return weights, biases


# ----------------------------- main ------------------------------------------
if __name__ == "__main__":
    key = jax.random.PRNGKey(0)
    k_emb, k_ids, k_head = jax.random.split(key, 3)

    # TODO(synk): the real backbone is an arbitrary frozen transformer; it is
    # modelled here as a deterministic embedding lookup producing
    # last_hidden_state [B, S, H].
    emb_table = jax.random.normal(k_emb, (VOCAB, H), jnp.float32)
    input_ids = jax.random.randint(k_ids, (B, S), 0, VOCAB)
    last_hidden_state = emb_table[input_ids]                         # [B, S, H]

    # variable-length attention masks (row 0: full, row 1: length 5)
    lengths = jnp.array([S, 5], dtype=jnp.int32)
    attention_mask = (jnp.arange(S)[None, :] < lengths[:, None]).astype(jnp.int32)

    weights, biases = init_head_params(k_head, H, HIDDEN_DIMS, N_CLASSES)

    logits = bprm_forward(last_hidden_state, attention_mask, weights, biases)
    logits = jax.block_until_ready(logits)

    # pure-JAX reference (same bf16 weight/activation rounding as the kernel,
    # f32 accumulation and f32 exact GELU).
    idx = (attention_mask.sum(-1) - 1) % S
    pooled_ref = last_hidden_state[jnp.arange(B), idx]
    x_ref = pooled_ref.astype(jnp.bfloat16).astype(jnp.float32)
    for w, b in zip(weights[:-1], biases[:-1]):
        wb = w.astype(jnp.bfloat16).astype(jnp.float32)
        y = x_ref @ wb + b
        x_ref = jax.nn.gelu(y, approximate=False)
        x_ref = x_ref.astype(jnp.bfloat16).astype(jnp.float32)
    w_last = weights[-1].astype(jnp.bfloat16).astype(jnp.float32)
    ref = x_ref @ w_last + biases[-1]

    assert logits.shape == (B, N_CLASSES)
    assert jnp.allclose(logits, ref, atol=1e-4, rtol=1e-4), (
        jnp.max(jnp.abs(logits - ref)))

    print("KERNEL_OK")
</pallas_src>

<mosaic_0001>
module attributes {stable_mosaic.version = 11 : i64} {
  func.func @bprm_head_kernel(%arg0: i32, %arg1: memref<256x32xbf16, #tpu.memory_space<vmem>>, %arg2: memref<288x128xbf16, #tpu.memory_space<vmem>>, %arg3: memref<3x128xf32, #tpu.memory_space<vmem>>, %arg4: memref<256x128xf32, #tpu.memory_space<vmem>>) attributes {dimension_semantics = [#tpu.dimension_semantics<parallel>], iteration_bounds = array<i64: 1>, scalar_prefetch = 0 : i64, scratch_operands = 0 : i64, tpu.core_type = #tpu.core_type<tc>, window_params = [{transform_indices = @transform_0, window_bounds = array<i64: 256, 32>}, {pipeline_mode = #tpu.pipeline_mode<synchronous>, transform_indices = @transform_1, window_bounds = array<i64: 288, 128>}, {pipeline_mode = #tpu.pipeline_mode<synchronous>, transform_indices = @transform_2, window_bounds = array<i64: 3, 128>}, {transform_indices = @transform_3, window_bounds = array<i64: 256, 128>}]} {
    %c0 = arith.constant 0 : index
    %c0_0 = arith.constant 0 : index
    %0 = vector.load %arg1[%c0, %c0_0] : memref<256x32xbf16, #tpu.memory_space<vmem>>, vector<256x32xbf16>
    %c0_1 = arith.constant 0 : index
    %c0_2 = arith.constant 0 : index
    %1 = vector.load %arg2[%c0_1, %c0_2] : memref<288x128xbf16, #tpu.memory_space<vmem>>, vector<32x128xbf16>
    %cst = arith.constant dense<0.000000e+00> : vector<256x128xf32>
    %2 = tpu.matmul %0, %1, %cst {dimension_numbers = #tpu.dot_dimension_numbers<[1], [0], [0], [1], [0, 0, 1, 1], [], []>} : vector<256x32xbf16>, vector<32x128xbf16>, vector<256x128xf32> -> vector<256x128xf32>
    %c0_3 = arith.constant 0 : index
    %c0_4 = arith.constant 0 : index
    %3 = vector.load %arg3[%c0_3, %c0_4] : memref<3x128xf32, #tpu.memory_space<vmem>>, vector<1x128xf32>
    %4 = vector.broadcast %3 : vector<1x128xf32> to vector<256x128xf32>
    %5 = arith.addf %2, %4 : vector<256x128xf32>
    %cst_5 = arith.constant 5.000000e-01 : f32
    %6 = vector.broadcast %cst_5 : f32 to vector<256x128xf32>
    %7 = arith.mulf %6, %5 : vector<256x128xf32>
    %cst_6 = arith.constant 0.707106769 : f32
    %8 = vector.broadcast %cst_6 : f32 to vector<256x128xf32>
    %9 = arith.mulf %5, %8 : vector<256x128xf32>
    %10 = math.erf %9 : vector<256x128xf32>
    %cst_7 = arith.constant 1.000000e+00 : f32
    %11 = vector.broadcast %cst_7 : f32 to vector<256x128xf32>
    %12 = arith.addf %11, %10 : vector<256x128xf32>
    %13 = arith.mulf %7, %12 : vector<256x128xf32>
    %14 = arith.truncf %13 : vector<256x128xf32> to vector<256x128xbf16>
    %c32 = arith.constant 32 : index
    %c0_8 = arith.constant 0 : index
    %15 = vector.load %arg2[%c32, %c0_8] : memref<288x128xbf16, #tpu.memory_space<vmem>>, vector<128x128xbf16>
    %cst_9 = arith.constant dense<0.000000e+00> : vector<256x128xf32>
    %16 = tpu.matmul %14, %15, %cst_9 {dimension_numbers = #tpu.dot_dimension_numbers<[1], [0], [0], [1], [0, 0, 1, 1], [], []>} : vector<256x128xbf16>, vector<128x128xbf16>, vector<256x128xf32> -> vector<256x128xf32>
    %c1 = arith.constant 1 : index
    %c0_10 = arith.constant 0 : index
    %17 = vector.load %arg3[%c1, %c0_10] : memref<3x128xf32, #tpu.memory_space<vmem>>, vector<1x128xf32>
    %18 = vector.broadcast %17 : vector<1x128xf32> to vector<256x128xf32>
    %19 = arith.addf %16, %18 : vector<256x128xf32>
    %cst_11 = arith.constant 5.000000e-01 : f32
    %20 = vector.broadcast %cst_11 : f32 to vector<256x128xf32>
    %21 = arith.mulf %20, %19 : vector<256x128xf32>
    %cst_12 = arith.constant 0.707106769 : f32
    %22 = vector.broadcast %cst_12 : f32 to vector<256x128xf32>
    %23 = arith.mulf %19, %22 : vector<256x128xf32>
    %24 = math.erf %23 : vector<256x128xf32>
    %cst_13 = arith.constant 1.000000e+00 : f32
    %25 = vector.broadcast %cst_13 : f32 to vector<256x128xf32>
    %26 = arith.addf %25, %24 : vector<256x128xf32>
    %27 = arith.mulf %21, %26 : vector<256x128xf32>
    %28 = arith.truncf %27 : vector<256x128xf32> to vector<256x128xbf16>
    %c160 = arith.constant 160 : index
    %c0_14 = arith.constant 0 : index
    %29 = vector.load %arg2[%c160, %c0_14] : memref<288x128xbf16, #tpu.memory_space<vmem>>, vector<128x128xbf16>
    %cst_15 = arith.constant dense<0.000000e+00> : vector<256x128xf32>
    %30 = tpu.matmul %28, %29, %cst_15 {dimension_numbers = #tpu.dot_dimension_numbers<[1], [0], [0], [1], [0, 0, 1, 1], [], []>} : vector<256x128xbf16>, vector<128x128xbf16>, vector<256x128xf32> -> vector<256x128xf32>
    %c2 = arith.constant 2 : index
    %c0_16 = arith.constant 0 : index
    %31 = vector.load %arg3[%c2, %c0_16] : memref<3x128xf32, #tpu.memory_space<vmem>>, vector<1x128xf32>
    %32 = vector.broadcast %31 : vector<1x128xf32> to vector<256x128xf32>
    %33 = arith.addf %30, %32 : vector<256x128xf32>
    %c0_17 = arith.constant 0 : index
    %c0_18 = arith.constant 0 : index
    %34 = vector.load %arg4[%c0_17, %c0_18] : memref<256x128xf32, #tpu.memory_space<vmem>>, vector<256x128xf32>
    tpu.vector_store %arg4[%c0_17, %c0_18], %33 {strides = array<i32>} : memref<256x128xf32, #tpu.memory_space<vmem>>, vector<256x128xf32>,
    return
  }
  func.func @transform_0(%arg0: i32) -> (i32, i32) {
    %c0_i32 = arith.constant 0 : i32
    %c0_i32_0 = arith.constant 0 : i32
    return %arg0, %c0_i32 : i32, i32
  }
  func.func @transform_1(%arg0: i32) -> (i32, i32) {
    %c0_i32 = arith.constant 0 : i32
    %c0_i32_0 = arith.constant 0 : i32
    %c0_i32_1 = arith.constant 0 : i32
    return %c0_i32, %c0_i32_0 : i32, i32
  }
  func.func @transform_2(%arg0: i32) -> (i32, i32) {
    %c0_i32 = arith.constant 0 : i32
    %c0_i32_0 = arith.constant 0 : i32
    %c0_i32_1 = arith.constant 0 : i32
    return %c0_i32, %c0_i32_0 : i32, i32
  }
  func.func @transform_3(%arg0: i32) -> (i32, i32) {
    %c0_i32 = arith.constant 0 : i32
    %c0_i32_0 = arith.constant 0 : i32
    return %arg0, %c0_i32 : i32, i32
  }
}

</mosaic_0001>

<llo_original>
// kernel: tpu_custom_call.1
$region0: #{tpu_custom_call.1}
  #allocation0 [shape = 'u32[]', space=smem, size = 0x4, offset = 0x4, fixed_abs, tag = 'smem constant byte address 0x4 - core index']
  #allocation1 [shape = 'u32[144,128]{1,0:T(1,128)}', space=vmem, size = 0x12000, scoped, tag = 'internal scratch']
  %s0 = inlined_call_operand.vmem [shape: bf16[256,32], index: 0, kind: input, shape index: {}]
  %s1 = inlined_call_operand.vmem [shape: bf16[288,128], index: 1, kind: input, shape index: {}]
  %s2 = inlined_call_operand.vmem [shape: f32[3,128], index: 2, kind: input, shape index: {}]
  %s3 = inlined_call_operand.hbm [shape: f32[256,128], index: 3, kind: output, shape index: {}]
  %s4 = sld [smem:[#allocation0]]
  $region22: #{tpu_custom_call.1} parent=0
    _
  %s6 = ssub.s32 1, %s4
  %s7 = scalar_select 0, %s6, %s4
  $region1: #{tpu_custom_call.1} parent=0
    #allocation2 [shape = 'u8[131072]{0}', space=vmem, size = 0x20000, scoped, tag = 'output window, operand 0, single buffered']
    #allocation3 [shape = 's32[1]{0}', space=sflag, size = 0x4, scoped, tag = 'scoped memory for tpu_custom_call.1']
    %8 = vsyncpa [#allocation3], 0
    // Predicated region
    $region2: #{tpu_custom_call.1} parent=1 // pred_check
      _
    $region3: #{tpu_custom_call.1} parent=1 // pred_check_branch
      %10 = sbr.rel (0) target = $region5
    $region4: #{tpu_custom_call.1} parent=1 // pred_region
      _
    $region5: #{tpu_custom_call.1} parent=1 // pred_fallthru
      _
    // Predicated region
    $region6: #{tpu_custom_call.1} parent=1 // pred_check
      _
    $region7: #{tpu_custom_call.1} parent=1 // pred_check_branch
      %12 = sbr.rel (0) target = $region9
    $region8: #{tpu_custom_call.1} parent=1 // pred_region
      _
    $region9: #{tpu_custom_call.1} parent=1 // pred_fallthru
      _
    // Predicated region
    $region10: #{tpu_custom_call.1} parent=1 // pred_check
      _
    $region11: #{tpu_custom_call.1} parent=1 // pred_check_branch
      %14 = sbr.rel (0) target = $region13
    $region12: #{tpu_custom_call.1} parent=1 // pred_region
      _
    $region13: #{tpu_custom_call.1} parent=1 // pred_fallthru
      _
    %v16 = vld [vmem:[%s0] sm:$0xf]
    %v17 = vld [vmem:[%s0 + $0x4] sm:$0xf]
    %v18 = vld [vmem:[%s0 + $0x8] sm:$0xf]
    %v19 = vld [vmem:[%s0 + $0xc] sm:$0xf]
    %v20 = vld [vmem:[%s0 + $0x10] sm:$0xf]
    %v21 = vld [vmem:[%s0 + $0x14] sm:$0xf]
    %v22 = vld [vmem:[%s0 + $0x18] sm:$0xf]
    %v23 = vld [vmem:[%s0 + $0x1c] sm:$0xf]
    %v24 = vld [vmem:[%s0 + $0x20] sm:$0xf]
    %v25 = vld [vmem:[%s0 + $0x24] sm:$0xf]
    %v26 = vld [vmem:[%s0 + $0x28] sm:$0xf]
    %v27 = vld [vmem:[%s0 + $0x2c] sm:$0xf]
    %v28 = vld [vmem:[%s0 + $0x30] sm:$0xf]
    %v29 = vld [vmem:[%s0 + $0x34] sm:$0xf]
    %v30 = vld [vmem:[%s0 + $0x38] sm:$0xf]
    %v31 = vld [vmem:[%s0 + $0x3c] sm:$0xf]
    %v32 = vld [vmem:[%s0 + $0x40] sm:$0xf]
    %v33 = vld [vmem:[%s0 + $0x44] sm:$0xf]
    %v34 = vld [vmem:[%s0 + $0x48] sm:$0xf]
    %v35 = vld [vmem:[%s0 + $0x4c] sm:$0xf]
    %v36 = vld [vmem:[%s0 + $0x50] sm:$0xf]
    %v37 = vld [vmem:[%s0 + $0x54] sm:$0xf]
    %v38 = vld [vmem:[%s0 + $0x58] sm:$0xf]
    %v39 = vld [vmem:[%s0 + $0x5c] sm:$0xf]
    %v40 = vld [vmem:[%s0 + $0x60] sm:$0xf]
    %v41 = vld [vmem:[%s0 + $0x64] sm:$0xf]
    %v42 = vld [vmem:[%s0 + $0x68] sm:$0xf]
    %v43 = vld [vmem:[%s0 + $0x6c] sm:$0xf]
    %v44 = vld [vmem:[%s0 + $0x70] sm:$0xf]
    %v45 = vld [vmem:[%s0 + $0x74] sm:$0xf]
    %v46 = vld [vmem:[%s0 + $0x78] sm:$0xf]
    %v47 = vld [vmem:[%s0 + $0x7c] sm:$0xf]
    %v48 = vld [vmem:[%s1] sm:$0xf]
    %v49 = vld [vmem:[%s1 + $0x4] sm:$0xf]
    %v50 = vld [vmem:[%s1 + $0x8] sm:$0xf]
    %v51 = vld [vmem:[%s1 + $0xc] sm:$0xf]
    %v52 = vld [vmem:[%s2] sm:$0x1]
    %v53 = vlaneseq
    %v54 = vshrl.u32 %v53, 7
    %v55 = vsub.s32 0, %v54
    %v56 = vrot.slane %v52, %v55
    %v89 = vunpack.c.l.b16 %v16
    %v90 = vunpack.c.l.b16 %v17
    %v91 = vunpack.c.l.b16 %v18
    %v92 = vunpack.c.l.b16 %v19
    %v93 = vunpack.c.l.b16 %v20
    %v94 = vunpack.c.l.b16 %v21
    %v95 = vunpack.c.l.b16 %v22
    %v96 = vunpack.c.l.b16 %v23
    %v97 = vunpack.c.l.b16 %v24
    %v98 = vunpack.c.l.b16 %v25
    %v99 = vunpack.c.l.b16 %v26
    %v100 = vunpack.c.l.b16 %v27
    %v101 = vunpack.c.l.b16 %v28
    %v102 = vunpack.c.l.b16 %v29
    %v103 = vunpack.c.l.b16 %v30
    %v104 = vunpack.c.l.b16 %v31
    %v105 = vunpack.c.l.b16 %v32
    %v106 = vunpack.c.l.b16 %v33
    %v107 = vunpack.c.l.b16 %v34
    %v108 = vunpack.c.l.b16 %v35
    %v109 = vunpack.c.l.b16 %v36
    %v110 = vunpack.c.l.b16 %v37
    %v111 = vunpack.c.l.b16 %v38
    %v112 = vunpack.c.l.b16 %v39
    %v113 = vunpack.c.l.b16 %v40
    %v114 = vunpack.c.l.b16 %v41
    %v115 = vunpack.c.l.b16 %v42
    %v116 = vunpack.c.l.b16 %v43
    %v117 = vunpack.c.l.b16 %v44
    %v118 = vunpack.c.l.b16 %v45
    %v119 = vunpack.c.l.b16 %v46
    %v120 = vunpack.c.l.b16 %v47
    %v121 = vpack.c.b16 %v90, %v89
    %v122 = vpack.c.b16 %v92, %v91
    %v123 = vpack.c.b16 %v94, %v93
    %v124 = vpack.c.b16 %v96, %v95
    %v125 = vpack.c.b16 %v98, %v97
    %v126 = vpack.c.b16 %v100, %v99
    %v127 = vpack.c.b16 %v102, %v101
    %v128 = vpack.c.b16 %v104, %v103
    %v129 = vpack.c.b16 %v106, %v105
    %v130 = vpack.c.b16 %v108, %v107
    %v131 = vpack.c.b16 %v110, %v109
    %v132 = vpack.c.b16 %v112, %v111
    %v133 = vpack.c.b16 %v114, %v113
    %v134 = vpack.c.b16 %v116, %v115
    %v135 = vpack.c.b16 %v118, %v117
    %v136 = vpack.c.b16 %v120, %v119
    %v141 = vunpack.c.l.b16 %v48
    %v142 = vunpack.c.l.b16 %v49
    %v143 = vunpack.c.l.b16 %v50
    %v144 = vunpack.c.l.b16 %v51
    %v145 = vpack.c.b16 %v142, %v141
    %v146 = vpack.c.b16 %v144, %v143
    %vm149 = vcmask 261120
    %v151 = vsel %vm149, %v121, 0
    %v154 = vsel %vm149, %v122, 0
    %v157 = vsel %vm149, %v123, 0
    %v160 = vsel %vm149, %v124, 0
    %v163 = vsel %vm149, %v125, 0
    %v166 = vsel %vm149, %v126, 0
    %v169 = vsel %vm149, %v127, 0
    %v172 = vsel %vm149, %v128, 0
    %v175 = vsel %vm149, %v129, 0
    %v178 = vsel %vm149, %v130, 0
    %v181 = vsel %vm149, %v131, 0
    %v184 = vsel %vm149, %v132, 0
    %v187 = vsel %vm149, %v133, 0
    %v190 = vsel %vm149, %v134, 0
    %v193 = vsel %vm149, %v135, 0
    %v196 = vsel %vm149, %v136, 0
    %198 = vmatprep.subr.bf16.mxu0 0
    %199 = vmatpush1.bf16.msra.mxu0 %v145
    %200 = vmatprep.subr.bf16.mxu0 0
    %201 = vmatpush1.bf16.msra.mxu0 %v146
    %202 = vmatprep.subr.bf16.mxu0 0
    %203 = vmatpush1.bf16.msra.mxu0 0
    %204 = vmatprep.subr.bf16.mxu0 0
    %205 = vmatpush1.bf16.msra.mxu0 0
    %206 = vmatprep.subr.bf16.mxu0 0
    %207 = vmatpush1.bf16.msra.mxu0 0
    %208 = vmatprep.subr.bf16.mxu0 0
    %209 = vmatpush1.bf16.msra.mxu0 0
    %210 = vmatprep.subr.bf16.mxu0 0
    %211 = vmatpush1.bf16.msra.mxu0 0
    %212 = vmatprep.subr.bf16.mxu0 0
    %213 = vmatpush1.bf16.msra.mxu0 0
    %214 = vmatprep.subr.bf16.mxu0 0
    %215 = vmatpush1.bf16.msra.mxu0 0
    %216 = vmatprep.subr.bf16.mxu0 0
    %217 = vmatpush1.bf16.msra.mxu0 0
    %218 = vmatprep.subr.bf16.mxu0 0
    %219 = vmatpush1.bf16.msra.mxu0 0
    %220 = vmatprep.subr.bf16.mxu0 0
    %221 = vmatpush1.bf16.msra.mxu0 0
    %222 = vmatprep.subr.bf16.mxu0 0
    %223 = vmatpush1.bf16.msra.mxu0 0
    %224 = vmatprep.subr.bf16.mxu0 0
    %225 = vmatpush1.bf16.msra.mxu0 0
    %226 = vmatprep.subr.bf16.mxu0 0
    %227 = vmatpush1.bf16.msra.mxu0 0
    %228 = vmatprep.subr.bf16.mxu0 0
    %229 = vmatpush1.bf16.msra.mxu0 0
    %230 = vmatprep.mubr.bf16.mxu0 0
    %231 = vmatmul.mubr.bf16.gmra.mrb[0].mxu0 %v151
    %v232 = vpop.f32.mrb[0].mxu0
    %v233 = vadd.f32 %v56, %v232
    %v234 = vpop.f32.mrb[0].mxu0
    %v235 = vpop.f32.mrb[0].mxu0
    %v236 = vadd.f32 %v56, %v235
    %v237 = vpop.f32.mrb[0].mxu0
    %238 = vmatprep.mubr.bf16.mxu0 0
    %239 = vmatmul.mubr.bf16.gmra.mrb[0].mxu0 %v154
    %v240 = vpop.f32.mrb[0].mxu0
    %v241 = vadd.f32 %v56, %v240
    %v242 = vpop.f32.mrb[0].mxu0
    %v243 = vpop.f32.mrb[0].mxu0
    %v244 = vadd.f32 %v56, %v243
    %v245 = vpop.f32.mrb[0].mxu0
    %246 = vmatprep.mubr.bf16.mxu0 0
    %247 = vmatmul.mubr.bf16.gmra.mrb[0].mxu0 %v157
    %v248 = vpop.f32.mrb[0].mxu0
    %v249 = vadd.f32 %v56, %v248
    %v250 = vpop.f32.mrb[0].mxu0
    %v251 = vpop.f32.mrb[0].mxu0
    %v252 = vadd.f32 %v56, %v251
    %v253 = vpop.f32.mrb[0].mxu0
    %254 = vmatprep.mubr.bf16.mxu0 0
    %255 = vmatmul.mubr.bf16.gmra.mrb[0].mxu0 %v160
    %v256 = vpop.f32.mrb[0].mxu0
    %v257 = vadd.f32 %v56, %v256
    %v258 = vpop.f32.mrb[0].mxu0
    %v259 = vpop.f32.mrb[0].mxu0
    %v260 = vadd.f32 %v56, %v259
    %v261 = vpop.f32.mrb[0].mxu0
    %262 = vmatprep.mubr.bf16.mxu0 0
    %263 = vmatmul.mubr.bf16.gmra.mrb[0].mxu0 %v163
    %v264 = vpop.f32.mrb[0].mxu0
    %v265 = vadd.f32 %v56, %v264
    %v266 = vpop.f32.mrb[0].mxu0
    %v267 = vpop.f32.mrb[0].mxu0
    %v268 = vadd.f32 %v56, %v267
    %v269 = vpop.f32.mrb[0].mxu0
    %270 = vmatprep.mubr.bf16.mxu0 0
    %271 = vmatmul.mubr.bf16.gmra.mrb[0].mxu0 %v166
    %v272 = vpop.f32.mrb[0].mxu0
    %v273 = vadd.f32 %v56, %v272
    %v274 = vpop.f32.mrb[0].mxu0
    %v275 = vpop.f32.mrb[0].mxu0
    %v276 = vadd.f32 %v56, %v275
    %v277 = vpop.f32.mrb[0].mxu0
    %278 = vmatprep.mubr.bf16.mxu0 0
    %279 = vmatmul.mubr.bf16.gmra.mrb[0].mxu0 %v169
    %v280 = vpop.f32.mrb[0].mxu0
    %v281 = vadd.f32 %v56, %v280
    %v282 = vpop.f32.mrb[0].mxu0
    %v283 = vpop.f32.mrb[0].mxu0
    %v284 = vadd.f32 %v56, %v283
    %v285 = vpop.f32.mrb[0].mxu0
    %286 = vmatprep.mubr.bf16.mxu0 0
    %287 = vmatmul.mubr.bf16.gmra.mrb[0].mxu0 %v172
    %v288 = vpop.f32.mrb[0].mxu0
    %v289 = vadd.f32 %v56, %v288
    %v290 = vpop.f32.mrb[0].mxu0
    %v291 = vpop.f32.mrb[0].mxu0
    %v292 = vadd.f32 %v56, %v291
    %v293 = vpop.f32.mrb[0].mxu0
    %294 = vmatprep.mubr.bf16.mxu0 0
    %295 = vmatmul.mubr.bf16.gmra.mrb[0].mxu0 %v175
    %v296 = vpop.f32.mrb[0].mxu0
    %v297 = vadd.f32 %v56, %v296
    %v298 = vpop.f32.mrb[0].mxu0
    %v299 = vpop.f32.mrb[0].mxu0
    %v300 = vadd.f32 %v56, %v299
    %v301 = vpop.f32.mrb[0].mxu0
    %302 = vmatprep.mubr.bf16.mxu0 0
    %303 = vmatmul.mubr.bf16.gmra.mrb[0].mxu0 %v178
    %v304 = vpop.f32.mrb[0].mxu0
    %v305 = vadd.f32 %v56, %v304
    %v306 = vpop.f32.mrb[0].mxu0
    %v307 = vpop.f32.mrb[0].mxu0
    %v308 = vadd.f32 %v56, %v307
    %v309 = vpop.f32.mrb[0].mxu0
    %310 = vmatprep.mubr.bf16.mxu0 0
    %311 = vmatmul.mubr.bf16.gmra.mrb[0].mxu0 %v181
    %v312 = vpop.f32.mrb[0].mxu0
    %v313 = vadd.f32 %v56, %v312
    %v314 = vpop.f32.mrb[0].mxu0
    %v315 = vpop.f32.mrb[0].mxu0
    %v316 = vadd.f32 %v56, %v315
    %v317 = vpop.f32.mrb[0].mxu0
    %318 = vmatprep.mubr.bf16.mxu0 0
    %319 = vmatmul.mubr.bf16.gmra.mrb[0].mxu0 %v184
    %v320 = vpop.f32.mrb[0].mxu0
    %v321 = vadd.f32 %v56, %v320
    %v322 = vpop.f32.mrb[0].mxu0
    %v323 = vpop.f32.mrb[0].mxu0
    %v324 = vadd.f32 %v56, %v323
    %v325 = vpop.f32.mrb[0].mxu0
    %326 = vmatprep.mubr.bf16.mxu0 0
    %327 = vmatmul.mubr.bf16.gmra.mrb[0].mxu0 %v187
    %v328 = vpop.f32.mrb[0].mxu0
    %v329 = vadd.f32 %v56, %v328
    %v330 = vpop.f32.mrb[0].mxu0
    %v331 = vpop.f32.mrb[0].mxu0
    %v332 = vadd.f32 %v56, %v331
    %v333 = vpop.f32.mrb[0].mxu0
    %334 = vmatprep.mubr.bf16.mxu0 0
    %335 = vmatmul.mubr.bf16.gmra.mrb[0].mxu0 %v190
    %v336 = vpop.f32.mrb[0].mxu0
    %v337 = vadd.f32 %v56, %v336
    %v338 = vpop.f32.mrb[0].mxu0
    %v339 = vpop.f32.mrb[0].mxu0
    %v340 = vadd.f32 %v56, %v339
    %v341 = vpop.f32.mrb[0].mxu0
    %342 = vmatprep.mubr.bf16.mxu0 0
    %343 = vmatmul.mubr.bf16.gmra.mrb[0].mxu0 %v193
    %v344 = vpop.f32.mrb[0].mxu0
    %v345 = vadd.f32 %v56, %v344
    %v346 = vpop.f32.mrb[0].mxu0
    %v347 = vpop.f32.mrb[0].mxu0
    %v348 = vadd.f32 %v56, %v347
    %v349 = vpop.f32.mrb[0].mxu0
    %350 = vmatprep.mubr.bf16.mxu0 0
    %351 = vmatmul.mubr.bf16.gmra.mrb[0].mxu0 %v196
    %v352 = vpop.f32.mrb[0].mxu0
    %v353 = vadd.f32 %v56, %v352
    %v354 = vpop.f32.mrb[0].mxu0
    %v355 = vpop.f32.mrb[0].mxu0
    %v356 = vadd.f32 %v56, %v355
    %v357 = vpop.f32.mrb[0].mxu0
    %358 = vdwg.mxu0
    %v359 = vmul.f32 %v233, 0.5
    %v360 = vmul.f32 %v236, 0.5
    %v361 = vmul.f32 %v241, 0.5
    %v362 = vmul.f32 %v244, 0.5
    %v363 = vmul.f32 %v249, 0.5
    %v364 = vmul.f32 %v252, 0.5
    %v365 = vmul.f32 %v257, 0.5
    %v366 = vmul.f32 %v260, 0.5
    %v367 = vmul.f32 %v265, 0.5
    %v368 = vmul.f32 %v268, 0.5
    %v369 = vmul.f32 %v273, 0.5
    %v370 = vmul.f32 %v276, 0.5
    %v371 = vmul.f32 %v281, 0.5
    %v372 = vmul.f32 %v284, 0.5
    %v373 = vmul.f32 %v289, 0.5
    %v374 = vmul.f32 %v292, 0.5
    %v375 = vmul.f32 %v297, 0.5
    %v376 = vmul.f32 %v300, 0.5
    %v377 = vmul.f32 %v305, 0.5
    %v378 = vmul.f32 %v308, 0.5
    %v379 = vmul.f32 %v313, 0.5
    %v380 = vmul.f32 %v316, 0.5
    %v381 = vmul.f32 %v321, 0.5
    %v382 = vmul.f32 %v324, 0.5
    %v383 = vmul.f32 %v329, 0.5
    %v384 = vmul.f32 %v332, 0.5
    %v385 = vmul.f32 %v337, 0.5
    %v386 = vmul.f32 %v340, 0.5
    %v387 = vmul.f32 %v345, 0.5
    %v388 = vmul.f32 %v348, 0.5
    %v389 = vmul.f32 %v353, 0.5
    %v390 = vmul.f32 %v356, 0.5
    %v391 = vmul.f32 %v233, 0.70710677
    %v392 = vmul.f32 %v236, 0.70710677
    %v393 = vmul.f32 %v241, 0.70710677
    %v394 = vmul.f32 %v244, 0.70710677
    %v395 = vmul.f32 %v249, 0.70710677
    %v396 = vmul.f32 %v252, 0.70710677
    %v397 = vmul.f32 %v257, 0.70710677
    %v398 = vmul.f32 %v260, 0.70710677
    %v399 = vmul.f32 %v265, 0.70710677
    %v400 = vmul.f32 %v268, 0.70710677
    %v401 = vmul.f32 %v273, 0.70710677
    %v402 = vmul.f32 %v276, 0.70710677
    %v403 = vmul.f32 %v281, 0.70710677
    %v404 = vmul.f32 %v284, 0.70710677
    %v405 = vmul.f32 %v289, 0.70710677
    %v406 = vmul.f32 %v292, 0.70710677
    %v407 = vmul.f32 %v297, 0.70710677
    %v408 = vmul.f32 %v300, 0.70710677
    %v409 = vmul.f32 %v305, 0.70710677
    %v410 = vmul.f32 %v308, 0.70710677
    %v411 = vmul.f32 %v313, 0.70710677
    %v412 = vmul.f32 %v316, 0.70710677
    %v413 = vmul.f32 %v321, 0.70710677
    %v414 = vmul.f32 %v324, 0.70710677
    %v415 = vmul.f32 %v329, 0.70710677
    %v416 = vmul.f32 %v332, 0.70710677
    %v417 = vmul.f32 %v337, 0.70710677
    %v418 = vmul.f32 %v340, 0.70710677
    %v419 = vmul.f32 %v345, 0.70710677
    %v420 = vmul.f32 %v348, 0.70710677
    %v421 = vmul.f32 %v353, 0.70710677
    %v422 = vmul.f32 %v356, 0.70710677
    %v423 = verf.f32.pop %v391
    %v424 = verf.f32.pop %v392
    %v425 = verf.f32.pop %v393
    %v426 = verf.f32.pop %v394
    %v427 = verf.f32.pop %v395
    %v428 = verf.f32.pop %v396
    %v429 = verf.f32.pop %v397
    %v430 = verf.f32.pop %v398
    %v431 = verf.f32.pop %v399
    %v432 = verf.f32.pop %v400
    %v433 = verf.f32.pop %v401
    %v434 = verf.f32.pop %v402
    %v435 = verf.f32.pop %v403
    %v436 = verf.f32.pop %v404
    %v437 = verf.f32.pop %v405
    %v438 = verf.f32.pop %v406
    %v439 = verf.f32.pop %v407
    %v440 = verf.f32.pop %v408
    %v441 = verf.f32.pop %v409
    %v442 = verf.f32.pop %v410
    %v443 = verf.f32.pop %v411
    %v444 = verf.f32.pop %v412
    %v445 = verf.f32.pop %v413
    %v446 = verf.f32.pop %v414
    %v447 = verf.f32.pop %v415
    %v448 = verf.f32.pop %v416
    %v449 = verf.f32.pop %v417
    %v450 = verf.f32.pop %v418
    %v451 = verf.f32.pop %v419
    %v452 = verf.f32.pop %v420
    %v453 = verf.f32.pop %v421
    %v454 = verf.f32.pop %v422
    %v455 = vadd.f32 %v423, 1.0
    %v456 = vadd.f32 %v424, 1.0
    %v457 = vadd.f32 %v425, 1.0
    %v458 = vadd.f32 %v426, 1.0
    %v459 = vadd.f32 %v427, 1.0
    %v460 = vadd.f32 %v428, 1.0
    %v461 = vadd.f32 %v429, 1.0
    %v462 = vadd.f32 %v430, 1.0
    %v463 = vadd.f32 %v431, 1.0
    %v464 = vadd.f32 %v432, 1.0
    %v465 = vadd.f32 %v433, 1.0
    %v466 = vadd.f32 %v434, 1.0
    %v467 = vadd.f32 %v435, 1.0
    %v468 = vadd.f32 %v436, 1.0
    %v469 = vadd.f32 %v437, 1.0
    %v470 = vadd.f32 %v438, 1.0
    %v471 = vadd.f32 %v439, 1.0
    %v472 = vadd.f32 %v440, 1.0
    %v473 = vadd.f32 %v441, 1.0
    %v474 = vadd.f32 %v442, 1.0
    %v475 = vadd.f32 %v443, 1.0
    %v476 = vadd.f32 %v444, 1.0
    %v477 = vadd.f32 %v445, 1.0
    %v478 = vadd.f32 %v446, 1.0
    %v479 = vadd.f32 %v447, 1.0
    %v480 = vadd.f32 %v448, 1.0
    %v481 = vadd.f32 %v449, 1.0
    %v482 = vadd.f32 %v450, 1.0
    %v483 = vadd.f32 %v451, 1.0
    %v484 = vadd.f32 %v452, 1.0
    %v485 = vadd.f32 %v453, 1.0
    %v486 = vadd.f32 %v454, 1.0
    %v487 = vmul.f32 %v359, %v455
    %v488 = vmul.f32 %v360, %v456
    %v489 = vmul.f32 %v361, %v457
    %v490 = vmul.f32 %v362, %v458
    %v491 = vmul.f32 %v363, %v459
    %v492 = vmul.f32 %v364, %v460
    %v493 = vmul.f32 %v365, %v461
    %v494 = vmul.f32 %v366, %v462
    %v495 = vmul.f32 %v367, %v463
    %v496 = vmul.f32 %v368, %v464
    %v497 = vmul.f32 %v369, %v465
    %v498 = vmul.f32 %v370, %v466
    %v499 = vmul.f32 %v371, %v467
    %v500 = vmul.f32 %v372, %v468
    %v501 = vmul.f32 %v373, %v469
    %v502 = vmul.f32 %v374, %v470
    %v503 = vmul.f32 %v375, %v471
    %v504 = vmul.f32 %v376, %v472
    %v505 = vmul.f32 %v377, %v473
    %v506 = vmul.f32 %v378, %v474
    %v507 = vmul.f32 %v379, %v475
    %v508 = vmul.f32 %v380, %v476
    %v509 = vmul.f32 %v381, %v477
    %v510 = vmul.f32 %v382, %v478
    %v511 = vmul.f32 %v383, %v479
    %v512 = vmul.f32 %v384, %v480
    %v513 = vmul.f32 %v385, %v481
    %v514 = vmul.f32 %v386, %v482
    %v515 = vmul.f32 %v387, %v483
    %v516 = vmul.f32 %v388, %v484
    %v517 = vmul.f32 %v389, %v485
    %v518 = vmul.f32 %v390, %v486
    %v519 = vpack.c.bf16 %v488, %v487
    %v520 = vpack.c.bf16 %v490, %v489
    %v521 = vpack.c.bf16 %v492, %v491
    %v522 = vpack.c.bf16 %v494, %v493
    %v523 = vpack.c.bf16 %v496, %v495
    %v524 = vpack.c.bf16 %v498, %v497
    %v525 = vpack.c.bf16 %v500, %v499
    %v526 = vpack.c.bf16 %v502, %v501
    %v527 = vpack.c.bf16 %v504, %v503
    %v528 = vpack.c.bf16 %v506, %v505
    %v529 = vpack.c.bf16 %v508, %v507
    %v530 = vpack.c.bf16 %v510, %v509
    %v531 = vpack.c.bf16 %v512, %v511
    %v532 = vpack.c.bf16 %v514, %v513
    %v533 = vpack.c.bf16 %v516, %v515
    %v534 = vpack.c.bf16 %v518, %v517
    %v535 = vld [vmem:[%s1 + $0x10] sm:$0xf]
    %v536 = vld [vmem:[%s1 + $0x14] sm:$0xf]
    %v537 = vld [vmem:[%s1 + $0x18] sm:$0xf]
    %v538 = vld [vmem:[%s1 + $0x1c] sm:$0xf]
    %v539 = vld [vmem:[%s1 + $0x20] sm:$0xf]
    %v540 = vld [vmem:[%s1 + $0x24] sm:$0xf]
    %v541 = vld [vmem:[%s1 + $0x28] sm:$0xf]
    %v542 = vld [vmem:[%s1 + $0x2c] sm:$0xf]
    %v543 = vld [vmem:[%s1 + $0x30] sm:$0xf]
    %v544 = vld [vmem:[%s1 + $0x34] sm:$0xf]
    %v545 = vld [vmem:[%s1 + $0x38] sm:$0xf]
    %v546 = vld [vmem:[%s1 + $0x3c] sm:$0xf]
    %v547 = vld [vmem:[%s1 + $0x40] sm:$0xf]
    %v548 = vld [vmem:[%s1 + $0x44] sm:$0xf]
    %v549 = vld [vmem:[%s1 + $0x48] sm:$0xf]
    %v550 = vld [vmem:[%s1 + $0x4c] sm:$0xf]
    %v551 = vld [vmem:[%s2 + $0x1] sm:$0x1]
    %v552 = vlaneseq
    %v553 = vshrl.u32 %v552, 7
    %v554 = vsub.s32 0, %v553
    %v555 = vrot.slane %v551, %v554
    %v572 = vunpack.c.l.b16 %v535
    %v573 = vunpack.c.l.b16 %v536
    %v574 = vunpack.c.l.b16 %v537
    %v575 = vunpack.c.l.b16 %v538
    %v576 = vunpack.c.l.b16 %v539
    %v577 = vunpack.c.l.b16 %v540
    %v578 = vunpack.c.l.b16 %v541
    %v579 = vunpack.c.l.b16 %v542
    %v580 = vunpack.c.l.b16 %v543
    %v581 = vunpack.c.l.b16 %v544
    %v582 = vunpack.c.l.b16 %v545
    %v583 = vunpack.c.l.b16 %v546
    %v584 = vunpack.c.l.b16 %v547
    %v585 = vunpack.c.l.b16 %v548
    %v586 = vunpack.c.l.b16 %v549
    %v587 = vunpack.c.l.b16 %v550
    %v588 = vpack.c.b16 %v573, %v572
    %v589 = vpack.c.b16 %v575, %v574
    %v590 = vpack.c.b16 %v577, %v576
    %v591 = vpack.c.b16 %v579, %v578
    %v592 = vpack.c.b16 %v581, %v580
    %v593 = vpack.c.b16 %v583, %v582
    %v594 = vpack.c.b16 %v585, %v584
    %v595 = vpack.c.b16 %v587, %v586
    %604 = vmatprep.subr.bf16.mxu0 0
    %605 = vmatpush1.bf16.msra.mxu0 %v588
    %606 = vmatprep.subr.bf16.mxu0 0
    %607 = vmatpush1.bf16.msra.mxu0 %v589
    %608 = vmatprep.subr.bf16.mxu0 0
    %609 = vmatpush1.bf16.msra.mxu0 %v590
    %610 = vmatprep.subr.bf16.mxu0 0
    %611 = vmatpush1.bf16.msra.mxu0 %v591
    %612 = vmatprep.subr.bf16.mxu0 0
    %613 = vmatpush1.bf16.msra.mxu0 %v592
    %614 = vmatprep.subr.bf16.mxu0 0
    %615 = vmatpush1.bf16.msra.mxu0 %v593
    %616 = vmatprep.subr.bf16.mxu0 0
    %617 = vmatpush1.bf16.msra.mxu0 %v594
    %618 = vmatprep.subr.bf16.mxu0 0
    %619 = vmatpush1.bf16.msra.mxu0 %v595
    %620 = vmatprep.subr.bf16.mxu0 0
    %621 = vmatpush1.bf16.msra.mxu0 0
    %622 = vmatprep.subr.bf16.mxu0 0
    %623 = vmatpush1.bf16.msra.mxu0 0
    %624 = vmatprep.subr.bf16.mxu0 0
    %625 = vmatpush1.bf16.msra.mxu0 0
    %626 = vmatprep.subr.bf16.mxu0 0
    %627 = vmatpush1.bf16.msra.mxu0 0
    %628 = vmatprep.subr.bf16.mxu0 0
    %629 = vmatpush1.bf16.msra.mxu0 0
    %630 = vmatprep.subr.bf16.mxu0 0
    %631 = vmatpush1.bf16.msra.mxu0 0
    %632 = vmatprep.subr.bf16.mxu0 0
    %633 = vmatpush1.bf16.msra.mxu0 0
    %634 = vmatprep.subr.bf16.mxu0 0
    %635 = vmatpush1.bf16.msra.mxu0 0
    %636 = vmatprep.mubr.bf16.mxu0 0
    %637 = vmatmul.mubr.bf16.gmra.mrb[0].mxu0 %v519
    %v638 = vpop.f32.mrb[0].mxu0
    %v639 = vadd.f32 %v555, %v638
    %v640 = vpop.f32.mrb[0].mxu0
    %v641 = vpop.f32.mrb[0].mxu0
    %v642 = vadd.f32 %v555, %v641
    %v643 = vpop.f32.mrb[0].mxu0
    %644 = vmatprep.mubr.bf16.mxu0 0
    %645 = vmatmul.mubr.bf16.gmra.mrb[0].mxu0 %v520
    %v646 = vpop.f32.mrb[0].mxu0
    %v647 = vadd.f32 %v555, %v646
    %v648 = vpop.f32.mrb[0].mxu0
    %v649 = vpop.f32.mrb[0].mxu0
    %v650 = vadd.f32 %v555, %v649
    %v651 = vpop.f32.mrb[0].mxu0
    %652 = vmatprep.mubr.bf16.mxu0 0
    %653 = vmatmul.mubr.bf16.gmra.mrb[0].mxu0 %v521
    %v654 = vpop.f32.mrb[0].mxu0
    %v655 = vadd.f32 %v555, %v654
    %v656 = vpop.f32.mrb[0].mxu0
    %v657 = vpop.f32.mrb[0].mxu0
    %v658 = vadd.f32 %v555, %v657
    %v659 = vpop.f32.mrb[0].mxu0
    %660 = vmatprep.mubr.bf16.mxu0 0
    %661 = vmatmul.mubr.bf16.gmra.mrb[0].mxu0 %v522
    %v662 = vpop.f32.mrb[0].mxu0
    %v663 = vadd.f32 %v555, %v662
    %v664 = vpop.f32.mrb[0].mxu0
    %v665 = vpop.f32.mrb[0].mxu0
    %v666 = vadd.f32 %v555, %v665
    %v667 = vpop.f32.mrb[0].mxu0
    %668 = vmatprep.mubr.bf16.mxu0 0
    %669 = vmatmul.mubr.bf16.gmra.mrb[0].mxu0 %v523
    %v670 = vpop.f32.mrb[0].mxu0
    %v671 = vadd.f32 %v555, %v670
    %v672 = vpop.f32.mrb[0].mxu0
    %v673 = vpop.f32.mrb[0].mxu0
    %v674 = vadd.f32 %v555, %v673
    %v675 = vpop.f32.mrb[0].mxu0
    %676 = vmatprep.mubr.bf16.mxu0 0
    %677 = vmatmul.mubr.bf16.gmra.mrb[0].mxu0 %v524
    %v678 = vpop.f32.mrb[0].mxu0
    %v679 = vadd.f32 %v555, %v678
    %v680 = vpop.f32.mrb[0].mxu0
    %v681 = vpop.f32.mrb[0].mxu0
    %v682 = vadd.f32 %v555, %v681
    %v683 = vpop.f32.mrb[0].mxu0
    %684 = vmatprep.mubr.bf16.mxu0 0
    %685 = vmatmul.mubr.bf16.gmra.mrb[0].mxu0 %v525
    %v686 = vpop.f32.mrb[0].mxu0
    %v687 = vadd.f32 %v555, %v686
    %v688 = vpop.f32.mrb[0].mxu0
    %v689 = vpop.f32.mrb[0].mxu0
    %v690 = vadd.f32 %v555, %v689
    %v691 = vpop.f32.mrb[0].mxu0
    %692 = vmatprep.mubr.bf16.mxu0 0
    %693 = vmatmul.mubr.bf16.gmra.mrb[0].mxu0 %v526
    %v694 = vpop.f32.mrb[0].mxu0
    %v695 = vadd.f32 %v555, %v694
    %v696 = vpop.f32.mrb[0].mxu0
    %v697 = vpop.f32.mrb[0].mxu0
    %v698 = vadd.f32 %v555, %v697
    %v699 = vpop.f32.mrb[0].mxu0
    %700 = vmatprep.mubr.bf16.mxu0 0
    %701 = vmatmul.mubr.bf16.gmra.mrb[0].mxu0 %v527
    %v702 = vpop.f32.mrb[0].mxu0
    %v703 = vadd.f32 %v555, %v702
    %v704 = vpop.f32.mrb[0].mxu0
    %v705 = vpop.f32.mrb[0].mxu0
    %v706 = vadd.f32 %v555, %v705
    %v707 = vpop.f32.mrb[0].mxu0
    %708 = vmatprep.mubr.bf16.mxu0 0
    %709 = vmatmul.mubr.bf16.gmra.mrb[0].mxu0 %v528
    %v710 = vpop.f32.mrb[0].mxu0
    %v711 = vadd.f32 %v555, %v710
    %v712 = vpop.f32.mrb[0].mxu0
    %v713 = vpop.f32.mrb[0].mxu0
    %v714 = vadd.f32 %v555, %v713
    %v715 = vpop.f32.mrb[0].mxu0
    %716 = vmatprep.mubr.bf16.mxu0 0
    %717 = vmatmul.mubr.bf16.gmra.mrb[0].mxu0 %v529
    %v718 = vpop.f32.mrb[0].mxu0
    %v719 = vadd.f32 %v555, %v718
    %v720 = vpop.f32.mrb[0].mxu0
    %v721 = vpop.f32.mrb[0].mxu0
    %v722 = vadd.f32 %v555, %v721
    %v723 = vpop.f32.mrb[0].mxu0
    %724 = vmatprep.mubr.bf16.mxu0 0
    %725 = vmatmul.mubr.bf16.gmra.mrb[0].mxu0 %v530
    %v726 = vpop.f32.mrb[0].mxu0
    %v727 = vadd.f32 %v555, %v726
    %v728 = vpop.f32.mrb[0].mxu0
    %v729 = vpop.f32.mrb[0].mxu0
    %v730 = vadd.f32 %v555, %v729
    %v731 = vpop.f32.mrb[0].mxu0
    %732 = vmatprep.mubr.bf16.mxu0 0
    %733 = vmatmul.mubr.bf16.gmra.mrb[0].mxu0 %v531
    %v734 = vpop.f32.mrb[0].mxu0
    %v735 = vadd.f32 %v555, %v734
    %v736 = vpop.f32.mrb[0].mxu0
    %v737 = vpop.f32.mrb[0].mxu0
    %v738 = vadd.f32 %v555, %v737
    %v739 = vpop.f32.mrb[0].mxu0
    %740 = vmatprep.mubr.bf16.mxu0 0
    %741 = vmatmul.mubr.bf16.gmra.mrb[0].mxu0 %v532
    %v742 = vpop.f32.mrb[0].mxu0
    %v743 = vadd.f32 %v555, %v742
    %v744 = vpop.f32.mrb[0].mxu0
    %v745 = vpop.f32.mrb[0].mxu0
    %v746 = vadd.f32 %v555, %v745
    %v747 = vpop.f32.mrb[0].mxu0
    %748 = vmatprep.mubr.bf16.mxu0 0
    %749 = vmatmul.mubr.bf16.gmra.mrb[0].mxu0 %v533
    %v750 = vpop.f32.mrb[0].mxu0
    %v751 = vadd.f32 %v555, %v750
    %v752 = vpop.f32.mrb[0].mxu0
    %v753 = vpop.f32.mrb[0].mxu0
    %v754 = vadd.f32 %v555, %v753
    %v755 = vpop.f32.mrb[0].mxu0
    %756 = vmatprep.mubr.bf16.mxu0 0
    %757 = vmatmul.mubr.bf16.gmra.mrb[0].mxu0 %v534
    %v758 = vpop.f32.mrb[0].mxu0
    %v759 = vadd.f32 %v555, %v758
    %v760 = vpop.f32.mrb[0].mxu0
    %v761 = vpop.f32.mrb[0].mxu0
    %v762 = vadd.f32 %v555, %v761
    %v763 = vpop.f32.mrb[0].mxu0
    %764 = vdwg.mxu0
    %v765 = vmul.f32 %v639, 0.5
    %v766 = vmul.f32 %v642, 0.5
    %v767 = vmul.f32 %v647, 0.5
    %v768 = vmul.f32 %v650, 0.5
    %v769 = vmul.f32 %v655, 0.5
    %v770 = vmul.f32 %v658, 0.5
    %v771 = vmul.f32 %v663, 0.5
    %v772 = vmul.f32 %v666, 0.5
    %v773 = vmul.f32 %v671, 0.5
    %v774 = vmul.f32 %v674, 0.5
    %v775 = vmul.f32 %v679, 0.5
    %v776 = vmul.f32 %v682, 0.5
    %v777 = vmul.f32 %v687, 0.5
    %v778 = vmul.f32 %v690, 0.5
    %v779 = vmul.f32 %v695, 0.5
    %v780 = vmul.f32 %v698, 0.5
    %v781 = vmul.f32 %v703, 0.5
    %v782 = vmul.f32 %v706, 0.5
    %v783 = vmul.f32 %v711, 0.5
    %v784 = vmul.f32 %v714, 0.5
    %v785 = vmul.f32 %v719, 0.5
    %v786 = vmul.f32 %v722, 0.5
    %v787 = vmul.f32 %v727, 0.5
    %v788 = vmul.f32 %v730, 0.5
    %v789 = vmul.f32 %v735, 0.5
    %v790 = vmul.f32 %v738, 0.5
    %v791 = vmul.f32 %v743, 0.5
    %v792 = vmul.f32 %v746, 0.5
    %v793 = vmul.f32 %v751, 0.5
    %v794 = vmul.f32 %v754, 0.5
    %v795 = vmul.f32 %v759, 0.5
    %v796 = vmul.f32 %v762, 0.5
    %v797 = vmul.f32 %v639, 0.70710677
    %v798 = vmul.f32 %v642, 0.70710677
    %v799 = vmul.f32 %v647, 0.70710677
    %v800 = vmul.f32 %v650, 0.70710677
    %v801 = vmul.f32 %v655, 0.70710677
    %v802 = vmul.f32 %v658, 0.70710677
    %v803 = vmul.f32 %v663, 0.70710677
    %v804 = vmul.f32 %v666, 0.70710677
    %v805 = vmul.f32 %v671, 0.70710677
    %v806 = vmul.f32 %v674, 0.70710677
    %v807 = vmul.f32 %v679, 0.70710677
    %v808 = vmul.f32 %v682, 0.70710677
    %v809 = vmul.f32 %v687, 0.70710677
    %v810 = vmul.f32 %v690, 0.70710677
    %v811 = vmul.f32 %v695, 0.70710677
    %v812 = vmul.f32 %v698, 0.70710677
    %v813 = vmul.f32 %v703, 0.70710677
    %v814 = vmul.f32 %v706, 0.70710677
    %v815 = vmul.f32 %v711, 0.70710677
    %v816 = vmul.f32 %v714, 0.70710677
    %v817 = vmul.f32 %v719, 0.70710677
    %v818 = vmul.f32 %v722, 0.70710677
    %v819 = vmul.f32 %v727, 0.70710677
    %v820 = vmul.f32 %v730, 0.70710677
    %v821 = vmul.f32 %v735, 0.70710677
    %v822 = vmul.f32 %v738, 0.70710677
    %v823 = vmul.f32 %v743, 0.70710677
    %v824 = vmul.f32 %v746, 0.70710677
    %v825 = vmul.f32 %v751, 0.70710677
    %v826 = vmul.f32 %v754, 0.70710677
    %v827 = vmul.f32 %v759, 0.70710677
    %v828 = vmul.f32 %v762, 0.70710677
    %v829 = verf.f32.pop %v797
    %v830 = verf.f32.pop %v798
    %v831 = verf.f32.pop %v799
    %v832 = verf.f32.pop %v800
    %v833 = verf.f32.pop %v801
    %v834 = verf.f32.pop %v802
    %v835 = verf.f32.pop %v803
    %v836 = verf.f32.pop %v804
    %v837 = verf.f32.pop %v805
    %v838 = verf.f32.pop %v806
    %v839 = verf.f32.pop %v807
    %v840 = verf.f32.pop %v808
    %v841 = verf.f32.pop %v809
    %v842 = verf.f32.pop %v810
    %v843 = verf.f32.pop %v811
    %v844 = verf.f32.pop %v812
    %v845 = verf.f32.pop %v813
    %v846 = verf.f32.pop %v814
    %v847 = verf.f32.pop %v815
    %v848 = verf.f32.pop %v816
    %v849 = verf.f32.pop %v817
    %v850 = verf.f32.pop %v818
    %v851 = verf.f32.pop %v819
    %v852 = verf.f32.pop %v820
    %v853 = verf.f32.pop %v821
    %v854 = verf.f32.pop %v822
    %v855 = verf.f32.pop %v823
    %v856 = verf.f32.pop %v824
    %v857 = verf.f32.pop %v825
    %v858 = verf.f32.pop %v826
    %v859 = verf.f32.pop %v827
    %v860 = verf.f32.pop %v828
    %v861 = vadd.f32 %v829, 1.0
    %v862 = vadd.f32 %v830, 1.0
    %v863 = vadd.f32 %v831, 1.0
    %v864 = vadd.f32 %v832, 1.0
    %v865 = vadd.f32 %v833, 1.0
    %v866 = vadd.f32 %v834, 1.0
    %v867 = vadd.f32 %v835, 1.0
    %v868 = vadd.f32 %v836, 1.0
    %v869 = vadd.f32 %v837, 1.0
    %v870 = vadd.f32 %v838, 1.0
    %v871 = vadd.f32 %v839, 1.0
    %v872 = vadd.f32 %v840, 1.0
    %v873 = vadd.f32 %v841, 1.0
    %v874 = vadd.f32 %v842, 1.0
    %v875 = vadd.f32 %v843, 1.0
    %v876 = vadd.f32 %v844, 1.0
    %v877 = vadd.f32 %v845, 1.0
    %v878 = vadd.f32 %v846, 1.0
    %v879 = vadd.f32 %v847, 1.0
    %v880 = vadd.f32 %v848, 1.0
    %v881 = vadd.f32 %v849, 1.0
    %v882 = vadd.f32 %v850, 1.0
    %v883 = vadd.f32 %v851, 1.0
    %v884 = vadd.f32 %v852, 1.0
    %v885 = vadd.f32 %v853, 1.0
    %v886 = vadd.f32 %v854, 1.0
    %v887 = vadd.f32 %v855, 1.0
    %v888 = vadd.f32 %v856, 1.0
    %v889 = vadd.f32 %v857, 1.0
    %v890 = vadd.f32 %v858, 1.0
    %v891 = vadd.f32 %v859, 1.0
    %v892 = vadd.f32 %v860, 1.0
    %v893 = vmul.f32 %v765, %v861
    %v894 = vmul.f32 %v766, %v862
    %v895 = vmul.f32 %v767, %v863
    %v896 = vmul.f32 %v768, %v864
    %v897 = vmul.f32 %v769, %v865
    %v898 = vmul.f32 %v770, %v866
    %v899 = vmul.f32 %v771, %v867
    %v900 = vmul.f32 %v772, %v868
    %v901 = vmul.f32 %v773, %v869
    %v902 = vmul.f32 %v774, %v870
    %v903 = vmul.f32 %v775, %v871
    %v904 = vmul.f32 %v776, %v872
    %v905 = vmul.f32 %v777, %v873
    %v906 = vmul.f32 %v778, %v874
    %v907 = vmul.f32 %v779, %v875
    %v908 = vmul.f32 %v780, %v876
    %v909 = vmul.f32 %v781, %v877
    %v910 = vmul.f32 %v782, %v878
    %v911 = vmul.f32 %v783, %v879
    %v912 = vmul.f32 %v784, %v880
    %v913 = vmul.f32 %v785, %v881
    %v914 = vmul.f32 %v786, %v882
    %v915 = vmul.f32 %v787, %v883
    %v916 = vmul.f32 %v788, %v884
    %v917 = vmul.f32 %v789, %v885
    %v918 = vmul.f32 %v790, %v886
    %v919 = vmul.f32 %v791, %v887
    %v920 = vmul.f32 %v792, %v888
    %v921 = vmul.f32 %v793, %v889
    %v922 = vmul.f32 %v794, %v890
    %v923 = vmul.f32 %v795, %v891
    %v924 = vmul.f32 %v796, %v892
    %v925 = vpack.c.bf16 %v894, %v893
    %v926 = vpack.c.bf16 %v896, %v895
    %v927 = vpack.c.bf16 %v898, %v897
    %v928 = vpack.c.bf16 %v900, %v899
    %v929 = vpack.c.bf16 %v902, %v901
    %v930 = vpack.c.bf16 %v904, %v903
    %v931 = vpack.c.bf16 %v906, %v905
    %v932 = vpack.c.bf16 %v908, %v907
    %v933 = vpack.c.bf16 %v910, %v909
    %v934 = vpack.c.bf16 %v912, %v911
    %v935 = vpack.c.bf16 %v914, %v913
    %v936 = vpack.c.bf16 %v916, %v915
    %v937 = vpack.c.bf16 %v918, %v917
    %v938 = vpack.c.bf16 %v920, %v919
    %v939 = vpack.c.bf16 %v922, %v921
    %v940 = vpack.c.bf16 %v924, %v923
    %v941 = vld [vmem:[%s1 + $0x50] sm:$0xf]
    %v942 = vld [vmem:[%s1 + $0x54] sm:$0xf]
    %v943 = vld [vmem:[%s1 + $0x58] sm:$0xf]
    %v944 = vld [vmem:[%s1 + $0x5c] sm:$0xf]
    %v945 = vld [vmem:[%s1 + $0x60] sm:$0xf]
    %v946 = vld [vmem:[%s1 + $0x64] sm:$0xf]
    %v947 = vld [vmem:[%s1 + $0x68] sm:$0xf]
    %v948 = vld [vmem:[%s1 + $0x6c] sm:$0xf]
    %v949 = vld [vmem:[%s1 + $0x70] sm:$0xf]
    %v950 = vld [vmem:[%s1 + $0x74] sm:$0xf]
    %v951 = vld [vmem:[%s1 + $0x78] sm:$0xf]
    %v952 = vld [vmem:[%s1 + $0x7c] sm:$0xf]
    %v953 = vld [vmem:[%s1 + $0x80] sm:$0xf]
    %v954 = vld [vmem:[%s1 + $0x84] sm:$0xf]
    %v955 = vld [vmem:[%s1 + $0x88] sm:$0xf]
    %v956 = vld [vmem:[%s1 + $0x8c] sm:$0xf]
    %v957 = vld [vmem:[%s2 + $0x2] sm:$0x1]
    %v958 = vlaneseq
    %v959 = vshrl.u32 %v958, 7
    %v960 = vsub.s32 0, %v959
    %v961 = vrot.slane %v957, %v960
    %v978 = vunpack.c.l.b16 %v941
    %v979 = vunpack.c.l.b16 %v942
    %v980 = vunpack.c.l.b16 %v943
    %v981 = vunpack.c.l.b16 %v944
    %v982 = vunpack.c.l.b16 %v945
    %v983 = vunpack.c.l.b16 %v946
    %v984 = vunpack.c.l.b16 %v947
    %v985 = vunpack.c.l.b16 %v948
    %v986 = vunpack.c.l.b16 %v949
    %v987 = vunpack.c.l.b16 %v950
    %v988 = vunpack.c.l.b16 %v951
    %v989 = vunpack.c.l.b16 %v952
    %v990 = vunpack.c.l.b16 %v953
    %v991 = vunpack.c.l.b16 %v954
    %v992 = vunpack.c.l.b16 %v955
    %v993 = vunpack.c.l.b16 %v956
    %v994 = vpack.c.b16 %v979, %v978
    %v995 = vpack.c.b16 %v981, %v980
    %v996 = vpack.c.b16 %v983, %v982
    %v997 = vpack.c.b16 %v985, %v984
    %v998 = vpack.c.b16 %v987, %v986
    %v999 = vpack.c.b16 %v989, %v988
    %v1000 = vpack.c.b16 %v991, %v990
    %v1001 = vpack.c.b16 %v993, %v992
    %1010 = vmatprep.subr.bf16.mxu0 0
    %1011 = vmatpush1.bf16.msra.mxu0 %v994
    %1012 = vmatprep.subr.bf16.mxu0 0
    %1013 = vmatpush1.bf16.msra.mxu0 %v995
    %1014 = vmatprep.subr.bf16.mxu0 0
    %1015 = vmatpush1.bf16.msra.mxu0 %v996
    %1016 = vmatprep.subr.bf16.mxu0 0
    %1017 = vmatpush1.bf16.msra.mxu0 %v997
    %1018 = vmatprep.subr.bf16.mxu0 0
    %1019 = vmatpush1.bf16.msra.mxu0 %v998
    %1020 = vmatprep.subr.bf16.mxu0 0
    %1021 = vmatpush1.bf16.msra.mxu0 %v999
    %1022 = vmatprep.subr.bf16.mxu0 0
    %1023 = vmatpush1.bf16.msra.mxu0 %v1000
    %1024 = vmatprep.subr.bf16.mxu0 0
    %1025 = vmatpush1.bf16.msra.mxu0 %v1001
    %1026 = vmatprep.subr.bf16.mxu0 0
    %1027 = vmatpush1.bf16.msra.mxu0 0
    %1028 = vmatprep.subr.bf16.mxu0 0
    %1029 = vmatpush1.bf16.msra.mxu0 0
    %1030 = vmatprep.subr.bf16.mxu0 0
    %1031 = vmatpush1.bf16.msra.mxu0 0
    %1032 = vmatprep.subr.bf16.mxu0 0
    %1033 = vmatpush1.bf16.msra.mxu0 0
    %1034 = vmatprep.subr.bf16.mxu0 0
    %1035 = vmatpush1.bf16.msra.mxu0 0
    %1036 = vmatprep.subr.bf16.mxu0 0
    %1037 = vmatpush1.bf16.msra.mxu0 0
    %1038 = vmatprep.subr.bf16.mxu0 0
    %1039 = vmatpush1.bf16.msra.mxu0 0
    %1040 = vmatprep.subr.bf16.mxu0 0
    %1041 = vmatpush1.bf16.msra.mxu0 0
    %1042 = vmatprep.mubr.bf16.mxu0 0
    %1043 = vmatmul.mubr.bf16.gmra.mrb[0].mxu0 %v925
    %v1044 = vpop.f32.mrb[0].mxu0
    %v1045 = vadd.f32 %v961, %v1044
    %v1046 = vpop.f32.mrb[0].mxu0
    %v1047 = vpop.f32.mrb[0].mxu0
    %v1048 = vadd.f32 %v961, %v1047
    %v1049 = vpop.f32.mrb[0].mxu0
    %1050 = vmatprep.mubr.bf16.mxu0 0
    %1051 = vmatmul.mubr.bf16.gmra.mrb[0].mxu0 %v926
    %v1052 = vpop.f32.mrb[0].mxu0
    %v1053 = vadd.f32 %v961, %v1052
    %v1054 = vpop.f32.mrb[0].mxu0
    %v1055 = vpop.f32.mrb[0].mxu0
    %v1056 = vadd.f32 %v961, %v1055
    %v1057 = vpop.f32.mrb[0].mxu0
    %1058 = vmatprep.mubr.bf16.mxu0 0
    %1059 = vmatmul.mubr.bf16.gmra.mrb[0].mxu0 %v927
    %v1060 = vpop.f32.mrb[0].mxu0
    %v1061 = vadd.f32 %v961, %v1060
    %v1062 = vpop.f32.mrb[0].mxu0
    %v1063 = vpop.f32.mrb[0].mxu0
    %v1064 = vadd.f32 %v961, %v1063
    %v1065 = vpop.f32.mrb[0].mxu0
    %1066 = vmatprep.mubr.bf16.mxu0 0
    %1067 = vmatmul.mubr.bf16.gmra.mrb[0].mxu0 %v928
    %v1068 = vpop.f32.mrb[0].mxu0
    %v1069 = vadd.f32 %v961, %v1068
    %v1070 = vpop.f32.mrb[0].mxu0
    %v1071 = vpop.f32.mrb[0].mxu0
    %v1072 = vadd.f32 %v961, %v1071
    %v1073 = vpop.f32.mrb[0].mxu0
    %1074 = vmatprep.mubr.bf16.mxu0 0
    %1075 = vmatmul.mubr.bf16.gmra.mrb[0].mxu0 %v929
    %v1076 = vpop.f32.mrb[0].mxu0
    %v1077 = vadd.f32 %v961, %v1076
    %v1078 = vpop.f32.mrb[0].mxu0
    %v1079 = vpop.f32.mrb[0].mxu0
    %v1080 = vadd.f32 %v961, %v1079
    %v1081 = vpop.f32.mrb[0].mxu0
    %1082 = vmatprep.mubr.bf16.mxu0 0
    %1083 = vmatmul.mubr.bf16.gmra.mrb[0].mxu0 %v930
    %v1084 = vpop.f32.mrb[0].mxu0
    %v1085 = vadd.f32 %v961, %v1084
    %v1086 = vpop.f32.mrb[0].mxu0
    %v1087 = vpop.f32.mrb[0].mxu0
    %v1088 = vadd.f32 %v961, %v1087
    %v1089 = vpop.f32.mrb[0].mxu0
    %1090 = vmatprep.mubr.bf16.mxu0 0
    %1091 = vmatmul.mubr.bf16.gmra.mrb[0].mxu0 %v931
    %v1092 = vpop.f32.mrb[0].mxu0
    %v1093 = vadd.f32 %v961, %v1092
    %v1094 = vpop.f32.mrb[0].mxu0
    %v1095 = vpop.f32.mrb[0].mxu0
    %v1096 = vadd.f32 %v961, %v1095
    %v1097 = vpop.f32.mrb[0].mxu0
    %1098 = vmatprep.mubr.bf16.mxu0 0
    %1099 = vmatmul.mubr.bf16.gmra.mrb[0].mxu0 %v932
    %v1100 = vpop.f32.mrb[0].mxu0
    %v1101 = vadd.f32 %v961, %v1100
    %v1102 = vpop.f32.mrb[0].mxu0
    %v1103 = vpop.f32.mrb[0].mxu0
    %v1104 = vadd.f32 %v961, %v1103
    %v1105 = vpop.f32.mrb[0].mxu0
    %1106 = vmatprep.mubr.bf16.mxu0 0
    %1107 = vmatmul.mubr.bf16.gmra.mrb[0].mxu0 %v933
    %v1108 = vpop.f32.mrb[0].mxu0
    %v1109 = vadd.f32 %v961, %v1108
    %v1110 = vpop.f32.mrb[0].mxu0
    %v1111 = vpop.f32.mrb[0].mxu0
    %v1112 = vadd.f32 %v961, %v1111
    %v1113 = vpop.f32.mrb[0].mxu0
    %1114 = vmatprep.mubr.bf16.mxu0 0
    %1115 = vmatmul.mubr.bf16.gmra.mrb[0].mxu0 %v934
    %v1116 = vpop.f32.mrb[0].mxu0
    %v1117 = vadd.f32 %v961, %v1116
    %v1118 = vpop.f32.mrb[0].mxu0
    %v1119 = vpop.f32.mrb[0].mxu0
    %v1120 = vadd.f32 %v961, %v1119
    %v1121 = vpop.f32.mrb[0].mxu0
    %1122 = vmatprep.mubr.bf16.mxu0 0
    %1123 = vmatmul.mubr.bf16.gmra.mrb[0].mxu0 %v935
    %v1124 = vpop.f32.mrb[0].mxu0
    %v1125 = vadd.f32 %v961, %v1124
    %v1126 = vpop.f32.mrb[0].mxu0
    %v1127 = vpop.f32.mrb[0].mxu0
    %v1128 = vadd.f32 %v961, %v1127
    %v1129 = vpop.f32.mrb[0].mxu0
    %1130 = vmatprep.mubr.bf16.mxu0 0
    %1131 = vmatmul.mubr.bf16.gmra.mrb[0].mxu0 %v936
    %v1132 = vpop.f32.mrb[0].mxu0
    %v1133 = vadd.f32 %v961, %v1132
    %v1134 = vpop.f32.mrb[0].mxu0
    %v1135 = vpop.f32.mrb[0].mxu0
    %v1136 = vadd.f32 %v961, %v1135
    %v1137 = vpop.f32.mrb[0].mxu0
    %1138 = vmatprep.mubr.bf16.mxu0 0
    %1139 = vmatmul.mubr.bf16.gmra.mrb[0].mxu0 %v937
    %v1140 = vpop.f32.mrb[0].mxu0
    %v1141 = vadd.f32 %v961, %v1140
    %v1142 = vpop.f32.mrb[0].mxu0
    %v1143 = vpop.f32.mrb[0].mxu0
    %v1144 = vadd.f32 %v961, %v1143
    %v1145 = vpop.f32.mrb[0].mxu0
    %1146 = vmatprep.mubr.bf16.mxu0 0
    %1147 = vmatmul.mubr.bf16.gmra.mrb[0].mxu0 %v938
    %v1148 = vpop.f32.mrb[0].mxu0
    %v1149 = vadd.f32 %v961, %v1148
    %v1150 = vpop.f32.mrb[0].mxu0
    %v1151 = vpop.f32.mrb[0].mxu0
    %v1152 = vadd.f32 %v961, %v1151
    %v1153 = vpop.f32.mrb[0].mxu0
    %1154 = vmatprep.mubr.bf16.mxu0 0
    %1155 = vmatmul.mubr.bf16.gmra.mrb[0].mxu0 %v939
    %v1156 = vpop.f32.mrb[0].mxu0
    %v1157 = vadd.f32 %v961, %v1156
    %v1158 = vpop.f32.mrb[0].mxu0
    %v1159 = vpop.f32.mrb[0].mxu0
    %v1160 = vadd.f32 %v961, %v1159
    %v1161 = vpop.f32.mrb[0].mxu0
    %1162 = vmatprep.mubr.bf16.mxu0 0
    %1163 = vmatmul.mubr.bf16.gmra.mrb[0].mxu0 %v940
    %v1164 = vpop.f32.mrb[0].mxu0
    %v1165 = vadd.f32 %v961, %v1164
    %v1166 = vpop.f32.mrb[0].mxu0
    %v1167 = vpop.f32.mrb[0].mxu0
    %v1168 = vadd.f32 %v961, %v1167
    %v1169 = vpop.f32.mrb[0].mxu0
    %1170 = vdwg.mxu0
    %1171 = vst [vmem:[#allocation2] sm:$0xff] %v1045
    %1172 = vst [vmem:[#allocation2 + $0x8] sm:$0xff] %v1048
    %1173 = vst [vmem:[#allocation2 + $0x10] sm:$0xff] %v1053
    %1174 = vst [vmem:[#allocation2 + $0x18] sm:$0xff] %v1056
    %1175 = vst [vmem:[#allocation2 + $0x20] sm:$0xff] %v1061
    %1176 = vst [vmem:[#allocation2 + $0x28] sm:$0xff] %v1064
    %1177 = vst [vmem:[#allocation2 + $0x30] sm:$0xff] %v1069
    %1178 = vst [vmem:[#allocation2 + $0x38] sm:$0xff] %v1072
    %1179 = vst [vmem:[#allocation2 + $0x40] sm:$0xff] %v1077
    %1180 = vst [vmem:[#allocation2 + $0x48] sm:$0xff] %v1080
    %1181 = vst [vmem:[#allocation2 + $0x50] sm:$0xff] %v1085
    %1182 = vst [vmem:[#allocation2 + $0x58] sm:$0xff] %v1088
    %1183 = vst [vmem:[#allocation2 + $0x60] sm:$0xff] %v1093
    %1184 = vst [vmem:[#allocation2 + $0x68] sm:$0xff] %v1096
    %1185 = vst [vmem:[#allocation2 + $0x70] sm:$0xff] %v1101
    %1186 = vst [vmem:[#allocation2 + $0x78] sm:$0xff] %v1104
    %1187 = vst [vmem:[#allocation2 + $0x80] sm:$0xff] %v1109
    %1188 = vst [vmem:[#allocation2 + $0x88] sm:$0xff] %v1112
    %1189 = vst [vmem:[#allocation2 + $0x90] sm:$0xff] %v1117
    %1190 = vst [vmem:[#allocation2 + $0x98] sm:$0xff] %v1120
    %1191 = vst [vmem:[#allocation2 + $0xa0] sm:$0xff] %v1125
    %1192 = vst [vmem:[#allocation2 + $0xa8] sm:$0xff] %v1128
    %1193 = vst [vmem:[#allocation2 + $0xb0] sm:$0xff] %v1133
    %1194 = vst [vmem:[#allocation2 + $0xb8] sm:$0xff] %v1136
    %1195 = vst [vmem:[#allocation2 + $0xc0] sm:$0xff] %v1141
    %1196 = vst [vmem:[#allocation2 + $0xc8] sm:$0xff] %v1144
    %1197 = vst [vmem:[#allocation2 + $0xd0] sm:$0xff] %v1149
    %1198 = vst [vmem:[#allocation2 + $0xd8] sm:$0xff] %v1152
    %1199 = vst [vmem:[#allocation2 + $0xe0] sm:$0xff] %v1157
    %1200 = vst [vmem:[#allocation2 + $0xe8] sm:$0xff] %v1160
    %1201 = vst [vmem:[#allocation2 + $0xf0] sm:$0xff] %v1165
    %1202 = vst [vmem:[#allocation2 + $0xf8] sm:$0xff] %v1168
    // Predicated region
    $region14: #{tpu_custom_call.1} parent=1 // pred_check
      _
    $region15: #{tpu_custom_call.1} parent=1 // pred_check_branch
      %1204 = sbr.rel (0) target = $region17
    $region16: #{tpu_custom_call.1} parent=1 // pred_region
      %s1206 = ssub.s32 4096, 4096
      %1207 = vsyncadd [#allocation3], %s1206
      %s1208 = sshll.u32 [#allocation2], 4
      %s1209 = int_to_ptr.vmem [resolvable:$true] %s1208
      %1214 = dma.vmem_to_hbm [thread:$0]  %s1209, 4096, %s3, [#allocation3], 128, 128, 8
    $region17: #{tpu_custom_call.1} parent=1 // pred_fallthru
      _
    // Predicated region
    $region18: #{tpu_custom_call.1} parent=1 // pred_check
      _
    $region19: #{tpu_custom_call.1} parent=1 // pred_check_branch
      %1216 = sbr.rel (0) target = $region21
    $region20: #{tpu_custom_call.1} parent=1 // pred_region
      %1217 = dma.done [#allocation3], 4096
    $region21: #{tpu_custom_call.1} parent=1 // pred_fallthru
      _
    %1218 = vsyncpa [#allocation3], 1

</llo_original>
